<compile_context>
chip_gen: v6e
topology: v6e:2x2x1
jax: 0.10.0
libtpu: 0.0.40
codegen_flags: <defaults>
</compile_context>

<pallas_src>
import jax
import jax.numpy as jnp
from jax.experimental import pallas as pl
from jax.experimental.pallas import tpu as pltpu


def _head_kernel(feat_ref, w_ref, b_ref, o_ref):
    """Fused head: adaptive max-pool(1,1) + flatten + fc + L2-normalize.

    feat_ref: (B, HW, C)  backbone feature map, channels on lanes
    w_ref   : (C, E)      fc weight (E = 128)
    b_ref   : (1, E)      fc bias
    o_ref   : (B, E)      L2-normalized embedding
    """
    # AdaptiveMaxPool2d((1,1)) == max over the spatial axis (sublane reduce, XLU).
    pooled = jnp.max(feat_ref[...], axis=1)                       # (B, C)

    # fc: MXU matmul with f32 accumulation, bias add on the VPU.
    y = jnp.dot(pooled, w_ref[...], preferred_element_type=jnp.float32)
    y = y + b_ref[...]                                            # (B, E)

    # F.normalize(p=2, dim=1): y / max(||y||_2, eps), eps = 1e-12.
    sq = jnp.sum(y * y, axis=-1, keepdims=True)                   # (B, 1)
    norm = jnp.sqrt(sq)
    inv = 1.0 / jnp.maximum(norm, 1e-12)
    o_ref[...] = (y * inv).astype(o_ref.dtype)


def resnet101_head_forward(feat, fc_w, fc_b):
    """Pallas implementation of Resnet101basedNet.forward AFTER the backbone.

    feat : [B, C, Hf, Wf] backbone feature map (C = 2048).
    fc_w : [C, E] fc weight (E = 128), fc_b : [1, E] fc bias.
    Returns [B, E] L2-normalized embeddings.
    """
    B, C, Hf, Wf = feat.shape
    E = fc_w.shape[1]
    HW = Hf * Wf

    # Layout plumbing (wrapper side): put channels (2048) on lanes and the
    # small spatial extent on sublanes -> (B, HW, C); avoids padding a
    # (Hf, Wf)=(4,4) trailing tile out to (8,128) per channel.
    feat_r = jnp.transpose(feat, (0, 2, 3, 1)).reshape(B, HW, C)

    bytes_accessed = (
        feat_r.size * feat_r.dtype.itemsize
        + fc_w.size * fc_w.dtype.itemsize
        + fc_b.size * fc_b.dtype.itemsize
        + B * E * 4
    )

    out = pl.pallas_call(
        _head_kernel,
        out_shape=jax.ShapeDtypeStruct((B, E), jnp.float32),
        grid_spec=pltpu.PrefetchScalarGridSpec(
            num_scalar_prefetch=0,
            grid=(1,),
            in_specs=[
                pl.BlockSpec((B, HW, C), lambda i: (0, 0, 0)),
                pl.BlockSpec((C, E), lambda i: (0, 0)),
                pl.BlockSpec((1, E), lambda i: (0, 0)),
            ],
            out_specs=pl.BlockSpec((B, E), lambda i: (0, 0)),
        ),
        compiler_params=pltpu.CompilerParams(
            dimension_semantics=("arbitrary",),
            vmem_limit_bytes=32 * 1024 * 1024,
        ),
        cost_estimate=pl.CostEstimate(
            flops=2 * B * C * E + B * C * HW,
            transcendentals=B,
            bytes_accessed=int(bytes_accessed),
        ),
    )(feat_r, fc_w, fc_b)
    return out


def init_fc_params(key, c=2048, e=128, dtype=jnp.float32):
    """Matches nn.init.kaiming_uniform_(weight, a=1) and zero bias."""
    # kaiming_uniform with a=1: bound = sqrt(6 / ((1 + a^2) * fan_in))
    bound = (6.0 / (2.0 * c)) ** 0.5
    w = jax.random.uniform(key, (c, e), dtype, minval=-bound, maxval=bound)
    b = jnp.zeros((1, e), dtype)
    return w, b


def _reference_forward(feat, fc_w, fc_b):
    """Pure-JAX reference: max_pool(1,1) -> view -> fc -> F.normalize."""
    pooled = jnp.max(feat, axis=(2, 3))                # [B, C]
    y = pooled @ fc_w + fc_b                           # [B, E]
    norm = jnp.sqrt(jnp.sum(y * y, axis=1, keepdims=True))
    return y / jnp.maximum(norm, 1e-12)


if __name__ == "__main__":
    # Small shapes: the backbone feature map a ResNet-101 would produce for a
    # 128x128 input image: B=2, C=2048 (fixed by the fc), Hf=Wf=4.
    B, C, Hf, Wf = 2, 2048, 4, 4
    E = 128

    key = jax.random.PRNGKey(0)
    kf, kw = jax.random.split(key)
    feat = jax.random.normal(kf, (B, C, Hf, Wf), jnp.float32)
    fc_w, fc_b = init_fc_params(kw, C, E)

    out = resnet101_head_forward(feat, fc_w, fc_b)
    jax.block_until_ready(out)

    ref = _reference_forward(feat, fc_w, fc_b)
    assert out.shape == (B, E)
    assert jnp.allclose(out, ref, atol=1e-5, rtol=1e-5)

    print("KERNEL_OK")
</pallas_src>

<mosaic_0001>
module attributes {stable_mosaic.version = 11 : i64} {
  func.func @_head_kernel(%arg0: i32, %arg1: memref<2x16x2048xf32, #tpu.memory_space<vmem>>, %arg2: memref<2048x128xf32, #tpu.memory_space<vmem>>, %arg3: memref<1x128xf32, #tpu.memory_space<vmem>>, %arg4: memref<2x128xf32, #tpu.memory_space<vmem>>) attributes {dimension_semantics = [#tpu.dimension_semantics<arbitrary>], iteration_bounds = array<i64: 1>, scalar_prefetch = 0 : i64, scratch_operands = 0 : i64, tpu.core_type = #tpu.core_type<tc>, window_params = [{pipeline_mode = #tpu.pipeline_mode<synchronous>, transform_indices = @transform_0, window_bounds = array<i64: 2, 16, 2048>}, {pipeline_mode = #tpu.pipeline_mode<synchronous>, transform_indices = @transform_1, window_bounds = array<i64: 2048, 128>}, {pipeline_mode = #tpu.pipeline_mode<synchronous>, transform_indices = @transform_2, window_bounds = array<i64: 1, 128>}, {pipeline_mode = #tpu.pipeline_mode<synchronous>, transform_indices = @transform_3, window_bounds = array<i64: 2, 128>}]} {
    %c0 = arith.constant 0 : index
    %c0_0 = arith.constant 0 : index
    %c0_1 = arith.constant 0 : index
    %0 = vector.load %arg1[%c0, %c0_0, %c0_1] : memref<2x16x2048xf32, #tpu.memory_space<vmem>>, vector<2x16x2048xf32>
    %cst = arith.constant dense<0xFF800000> : vector<2x2048xf32>
    %1 = vector.multi_reduction <maximumf>, %0, %cst [1] : vector<2x16x2048xf32> to vector<2x2048xf32>
    %c0_2 = arith.constant 0 : index
    %c0_3 = arith.constant 0 : index
    %2 = vector.load %arg2[%c0_2, %c0_3] : memref<2048x128xf32, #tpu.memory_space<vmem>>, vector<2048x128xf32>
    %cst_4 = arith.constant dense<0.000000e+00> : vector<2x128xf32>
    %3 = tpu.matmul %1, %2, %cst_4 {dimension_numbers = #tpu.dot_dimension_numbers<[1], [0], [0], [1], [0, 0, 1, 1], [], []>} : vector<2x2048xf32>, vector<2048x128xf32>, vector<2x128xf32> -> vector<2x128xf32>
    %c0_5 = arith.constant 0 : index
    %c0_6 = arith.constant 0 : index
    %4 = vector.load %arg3[%c0_5, %c0_6] : memref<1x128xf32, #tpu.memory_space<vmem>>, vector<1x128xf32>
    %5 = vector.broadcast %4 : vector<1x128xf32> to vector<2x128xf32>
    %6 = arith.addf %3, %5 : vector<2x128xf32>
    %7 = arith.mulf %6, %6 : vector<2x128xf32>
    %cst_7 = arith.constant dense<0.000000e+00> : vector<2xf32>
    %8 = vector.multi_reduction <add>, %7, %cst_7 [1] : vector<2x128xf32> to vector<2xf32>
    %9 = vector.shape_cast %8 : vector<2xf32> to vector<2x1xf32>
    %10 = math.sqrt %9 : vector<2x1xf32>
    %cst_8 = arith.constant 9.99999996E-13 : f32
    %11 = vector.broadcast %cst_8 : f32 to vector<2x1xf32>
    %12 = arith.maximumf %10, %11 : vector<2x1xf32>
    %cst_9 = arith.constant 1.000000e+00 : f32
    %13 = vector.broadcast %cst_9 : f32 to vector<2x1xf32>
    %14 = arith.divf %13, %12 : vector<2x1xf32>
    %15 = vector.broadcast %14 : vector<2x1xf32> to vector<2x128xf32>
    %16 = arith.mulf %6, %15 : vector<2x128xf32>
    %c0_10 = arith.constant 0 : index
    %c0_11 = arith.constant 0 : index
    %17 = vector.load %arg4[%c0_10, %c0_11] : memref<2x128xf32, #tpu.memory_space<vmem>>, vector<2x128xf32>
    tpu.vector_store %arg4[%c0_10, %c0_11], %16 {strides = array<i32>} : memref<2x128xf32, #tpu.memory_space<vmem>>, vector<2x128xf32>,
    return
  }
  func.func @transform_0(%arg0: i32) -> (i32, i32, i32) {
    %c0_i32 = arith.constant 0 : i32
    %c0_i32_0 = arith.constant 0 : i32
    %c0_i32_1 = arith.constant 0 : i32
    %c0_i32_2 = arith.constant 0 : i32
    return %c0_i32, %c0_i32_0, %c0_i32_1 : i32, i32, i32
  }
  func.func @transform_1(%arg0: i32) -> (i32, i32) {
    %c0_i32 = arith.constant 0 : i32
    %c0_i32_0 = arith.constant 0 : i32
    %c0_i32_1 = arith.constant 0 : i32
    return %c0_i32, %c0_i32_0 : i32, i32
  }
  func.func @transform_2(%arg0: i32) -> (i32, i32) {
    %c0_i32 = arith.constant 0 : i32
    %c0_i32_0 = arith.constant 0 : i32
    %c0_i32_1 = arith.constant 0 : i32
    return %c0_i32, %c0_i32_0 : i32, i32
  }
  func.func @transform_3(%arg0: i32) -> (i32, i32) {
    %c0_i32 = arith.constant 0 : i32
    %c0_i32_0 = arith.constant 0 : i32
    %c0_i32_1 = arith.constant 0 : i32
    return %c0_i32, %c0_i32_0 : i32, i32
  }
}

</mosaic_0001>

<llo_original>
// kernel: tpu_custom_call.1
$region0: #{tpu_custom_call.1}
  #allocation0 [shape = 'u32[]', space=smem, size = 0x4, offset = 0x4, fixed_abs, tag = 'smem constant byte address 0x4 - core index']
  #allocation1 [shape = 'u32[144,128]{1,0:T(1,128)}', space=vmem, size = 0x12000, scoped, tag = 'internal scratch']
  %s0 = inlined_call_operand.hbm [shape: f32[2,16,2048], index: 0, kind: input, shape index: {}]
  %s1 = inlined_call_operand.hbm [shape: f32[2048,128], index: 1, kind: input, shape index: {}]
  %s2 = inlined_call_operand.vmem [shape: f32[1,128], index: 2, kind: input, shape index: {}]
  %s3 = inlined_call_operand.hbm [shape: f32[2,128], index: 3, kind: output, shape index: {}]
  %s4 = sld [smem:[#allocation0]]
  $region30: #{tpu_custom_call.1} parent=0
    _
  %s6 = ssub.s32 1, %s4
  %s7 = scalar_select 0, %s6, %s4
  $region1: #{tpu_custom_call.1} parent=0
    #allocation2 [shape = 'u8[262144]{0}', space=vmem, size = 0x40000, scoped, tag = 'input window, operand 0, single buffered']
    #allocation3 [shape = 's32[1]{0}', space=sflag, size = 0x4, scoped, tag = 'scoped memory for tpu_custom_call.1']
    #allocation4 [shape = 's32[1]{0}', space=sflag, size = 0x4, scoped, tag = 'scoped memory for tpu_custom_call.1']
    #allocation5 [shape = 'u8[1048576]{0}', space=vmem, size = 0x100000, scoped, tag = 'input window, operand 1, single buffered']
    #allocation6 [shape = 's32[1]{0}', space=sflag, size = 0x4, scoped, tag = 'scoped memory for tpu_custom_call.1']
    #allocation7 [shape = 'u8[1024]{0}', space=vmem, size = 0x400, scoped, tag = 'output window, operand 0, single buffered']
    %8 = vsyncpa [#allocation3], 0
    %9 = vsyncpa [#allocation6], 0
    %10 = vsyncpa [#allocation4], 0
    // Predicated region
    $region2: #{tpu_custom_call.1} parent=1 // pred_check
      _
    $region3: #{tpu_custom_call.1} parent=1 // pred_check_branch
      %12 = sbr.rel (0) target = $region5
    $region4: #{tpu_custom_call.1} parent=1 // pred_region
      %s14 = ssub.s32 8192, 8192
      %15 = vsyncadd [#allocation3], %s14
      %s16 = sshll.u32 [#allocation2], 4
      %s17 = int_to_ptr.vmem [resolvable:$true] %s16
      %22 = dma.hbm_to_vmem [thread:$0]  %s0, 8192, %s17, [#allocation3], 2048, 2048, 128
    $region5: #{tpu_custom_call.1} parent=1 // pred_fallthru
      _
    // Predicated region
    $region6: #{tpu_custom_call.1} parent=1 // pred_check
      _
    $region7: #{tpu_custom_call.1} parent=1 // pred_check_branch
      %24 = sbr.rel (0) target = $region9
    $region8: #{tpu_custom_call.1} parent=1 // pred_region
      %s26 = ssub.s32 32768, 32768
      %27 = vsyncadd [#allocation6], %s26
      %s28 = sshll.u32 [#allocation5], 4
      %s29 = int_to_ptr.vmem [resolvable:$true] %s28
      %34 = dma.hbm_to_vmem [thread:$0]  %s1, 32768, %s29, [#allocation6], 128, 128, 8
    $region9: #{tpu_custom_call.1} parent=1 // pred_fallthru
      _
    // Predicated region
    $region10: #{tpu_custom_call.1} parent=1 // pred_check
      _
    $region11: #{tpu_custom_call.1} parent=1 // pred_check_branch
      %36 = sbr.rel (0) target = $region13
    $region12: #{tpu_custom_call.1} parent=1 // pred_region
      _
    $region13: #{tpu_custom_call.1} parent=1 // pred_fallthru
      _
    // Predicated region
    $region14: #{tpu_custom_call.1} parent=1 // pred_check
      _
    $region15: #{tpu_custom_call.1} parent=1 // pred_check_branch
      %38 = sbr.rel (0) target = $region17
    $region16: #{tpu_custom_call.1} parent=1 // pred_region
      %39 = dma.done [#allocation3], 8192
    $region17: #{tpu_custom_call.1} parent=1 // pred_fallthru
      _
    // Predicated region
    $region18: #{tpu_custom_call.1} parent=1 // pred_check
      _
    $region19: #{tpu_custom_call.1} parent=1 // pred_check_branch
      %41 = sbr.rel (0) target = $region21
    $region20: #{tpu_custom_call.1} parent=1 // pred_region
      %42 = dma.done [#allocation6], 32768
    $region21: #{tpu_custom_call.1} parent=1 // pred_fallthru
      _
    %v43 = vld [vmem:[#allocation2] sm:$0xff]
    %v44 = vld [vmem:[#allocation2 + $0x8] sm:$0xff]
    %v45 = vld [vmem:[#allocation2 + $0x10] sm:$0xff]
    %v46 = vld [vmem:[#allocation2 + $0x18] sm:$0xff]
    %v47 = vld [vmem:[#allocation2 + $0x20] sm:$0xff]
    %v48 = vld [vmem:[#allocation2 + $0x28] sm:$0xff]
    %v49 = vld [vmem:[#allocation2 + $0x30] sm:$0xff]
    %v50 = vld [vmem:[#allocation2 + $0x38] sm:$0xff]
    %v51 = vld [vmem:[#allocation2 + $0x40] sm:$0xff]
    %v52 = vld [vmem:[#allocation2 + $0x48] sm:$0xff]
    %v53 = vld [vmem:[#allocation2 + $0x50] sm:$0xff]
    %v54 = vld [vmem:[#allocation2 + $0x58] sm:$0xff]
    %v55 = vld [vmem:[#allocation2 + $0x60] sm:$0xff]
    %v56 = vld [vmem:[#allocation2 + $0x68] sm:$0xff]
    %v57 = vld [vmem:[#allocation2 + $0x70] sm:$0xff]
    %v58 = vld [vmem:[#allocation2 + $0x78] sm:$0xff]
    %v59 = vld [vmem:[#allocation2 + $0x80] sm:$0xff]
    %v60 = vld [vmem:[#allocation2 + $0x88] sm:$0xff]
    %v61 = vld [vmem:[#allocation2 + $0x90] sm:$0xff]
    %v62 = vld [vmem:[#allocation2 + $0x98] sm:$0xff]
    %v63 = vld [vmem:[#allocation2 + $0xa0] sm:$0xff]
    %v64 = vld [vmem:[#allocation2 + $0xa8] sm:$0xff]
    %v65 = vld [vmem:[#allocation2 + $0xb0] sm:$0xff]
    %v66 = vld [vmem:[#allocation2 + $0xb8] sm:$0xff]
    %v67 = vld [vmem:[#allocation2 + $0xc0] sm:$0xff]
    %v68 = vld [vmem:[#allocation2 + $0xc8] sm:$0xff]
    %v69 = vld [vmem:[#allocation2 + $0xd0] sm:$0xff]
    %v70 = vld [vmem:[#allocation2 + $0xd8] sm:$0xff]
    %v71 = vld [vmem:[#allocation2 + $0xe0] sm:$0xff]
    %v72 = vld [vmem:[#allocation2 + $0xe8] sm:$0xff]
    %v73 = vld [vmem:[#allocation2 + $0xf0] sm:$0xff]
    %v74 = vld [vmem:[#allocation2 + $0xf8] sm:$0xff]
    %v75 = vld [vmem:[#allocation2 + $0x100] sm:$0xff]
    %v76 = vld [vmem:[#allocation2 + $0x108] sm:$0xff]
    %v77 = vld [vmem:[#allocation2 + $0x110] sm:$0xff]
    %v78 = vld [vmem:[#allocation2 + $0x118] sm:$0xff]
    %v79 = vld [vmem:[#allocation2 + $0x120] sm:$0xff]
    %v80 = vld [vmem:[#allocation2 + $0x128] sm:$0xff]
    %v81 = vld [vmem:[#allocation2 + $0x130] sm:$0xff]
    %v82 = vld [vmem:[#allocation2 + $0x138] sm:$0xff]
    %v83 = vld [vmem:[#allocation2 + $0x140] sm:$0xff]
    %v84 = vld [vmem:[#allocation2 + $0x148] sm:$0xff]
    %v85 = vld [vmem:[#allocation2 + $0x150] sm:$0xff]
    %v86 = vld [vmem:[#allocation2 + $0x158] sm:$0xff]
    %v87 = vld [vmem:[#allocation2 + $0x160] sm:$0xff]
    %v88 = vld [vmem:[#allocation2 + $0x168] sm:$0xff]
    %v89 = vld [vmem:[#allocation2 + $0x170] sm:$0xff]
    %v90 = vld [vmem:[#allocation2 + $0x178] sm:$0xff]
    %v91 = vld [vmem:[#allocation2 + $0x180] sm:$0xff]
    %v92 = vld [vmem:[#allocation2 + $0x188] sm:$0xff]
    %v93 = vld [vmem:[#allocation2 + $0x190] sm:$0xff]
    %v94 = vld [vmem:[#allocation2 + $0x198] sm:$0xff]
    %v95 = vld [vmem:[#allocation2 + $0x1a0] sm:$0xff]
    %v96 = vld [vmem:[#allocation2 + $0x1a8] sm:$0xff]
    %v97 = vld [vmem:[#allocation2 + $0x1b0] sm:$0xff]
    %v98 = vld [vmem:[#allocation2 + $0x1b8] sm:$0xff]
    %v99 = vld [vmem:[#allocation2 + $0x1c0] sm:$0xff]
    %v100 = vld [vmem:[#allocation2 + $0x1c8] sm:$0xff]
    %v101 = vld [vmem:[#allocation2 + $0x1d0] sm:$0xff]
    %v102 = vld [vmem:[#allocation2 + $0x1d8] sm:$0xff]
    %v103 = vld [vmem:[#allocation2 + $0x1e0] sm:$0xff]
    %v104 = vld [vmem:[#allocation2 + $0x1e8] sm:$0xff]
    %v105 = vld [vmem:[#allocation2 + $0x1f0] sm:$0xff]
    %v106 = vld [vmem:[#allocation2 + $0x1f8] sm:$0xff]
    %v107 = vmax.f32 %v43, %v59
    %v108 = vrot.slane %v107, 4
    %v109 = vmax.f32 %v107, %v108
    %v110 = vrot.slane %v109, 2
    %v111 = vmax.f32 %v109, %v110
    %v112 = vrot.slane %v111, 1
    %v113 = vmax.f32 %v111, %v112
    %v114 = vmax.f32 %v44, %v60
    %v115 = vrot.slane %v114, 4
    %v116 = vmax.f32 %v114, %v115
    %v117 = vrot.slane %v116, 2
    %v118 = vmax.f32 %v116, %v117
    %v119 = vrot.slane %v118, 1
    %v120 = vmax.f32 %v118, %v119
    %v121 = vmax.f32 %v45, %v61
    %v122 = vrot.slane %v121, 4
    %v123 = vmax.f32 %v121, %v122
    %v124 = vrot.slane %v123, 2
    %v125 = vmax.f32 %v123, %v124
    %v126 = vrot.slane %v125, 1
    %v127 = vmax.f32 %v125, %v126
    %v128 = vmax.f32 %v46, %v62
    %v129 = vrot.slane %v128, 4
    %v130 = vmax.f32 %v128, %v129
    %v131 = vrot.slane %v130, 2
    %v132 = vmax.f32 %v130, %v131
    %v133 = vrot.slane %v132, 1
    %v134 = vmax.f32 %v132, %v133
    %v135 = vmax.f32 %v47, %v63
    %v136 = vrot.slane %v135, 4
    %v137 = vmax.f32 %v135, %v136
    %v138 = vrot.slane %v137, 2
    %v139 = vmax.f32 %v137, %v138
    %v140 = vrot.slane %v139, 1
    %v141 = vmax.f32 %v139, %v140
    %v142 = vmax.f32 %v48, %v64
    %v143 = vrot.slane %v142, 4
    %v144 = vmax.f32 %v142, %v143
    %v145 = vrot.slane %v144, 2
    %v146 = vmax.f32 %v144, %v145
    %v147 = vrot.slane %v146, 1
    %v148 = vmax.f32 %v146, %v147
    %v149 = vmax.f32 %v49, %v65
    %v150 = vrot.slane %v149, 4
    %v151 = vmax.f32 %v149, %v150
    %v152 = vrot.slane %v151, 2
    %v153 = vmax.f32 %v151, %v152
    %v154 = vrot.slane %v153, 1
    %v155 = vmax.f32 %v153, %v154
    %v156 = vmax.f32 %v50, %v66
    %v157 = vrot.slane %v156, 4
    %v158 = vmax.f32 %v156, %v157
    %v159 = vrot.slane %v158, 2
    %v160 = vmax.f32 %v158, %v159
    %v161 = vrot.slane %v160, 1
    %v162 = vmax.f32 %v160, %v161
    %v163 = vmax.f32 %v51, %v67
    %v164 = vrot.slane %v163, 4
    %v165 = vmax.f32 %v163, %v164
    %v166 = vrot.slane %v165, 2
    %v167 = vmax.f32 %v165, %v166
    %v168 = vrot.slane %v167, 1
    %v169 = vmax.f32 %v167, %v168
    %v170 = vmax.f32 %v52, %v68
    %v171 = vrot.slane %v170, 4
    %v172 = vmax.f32 %v170, %v171
    %v173 = vrot.slane %v172, 2
    %v174 = vmax.f32 %v172, %v173
    %v175 = vrot.slane %v174, 1
    %v176 = vmax.f32 %v174, %v175
    %v177 = vmax.f32 %v53, %v69
    %v178 = vrot.slane %v177, 4
    %v179 = vmax.f32 %v177, %v178
    %v180 = vrot.slane %v179, 2
    %v181 = vmax.f32 %v179, %v180
    %v182 = vrot.slane %v181, 1
    %v183 = vmax.f32 %v181, %v182
    %v184 = vmax.f32 %v54, %v70
    %v185 = vrot.slane %v184, 4
    %v186 = vmax.f32 %v184, %v185
    %v187 = vrot.slane %v186, 2
    %v188 = vmax.f32 %v186, %v187
    %v189 = vrot.slane %v188, 1
    %v190 = vmax.f32 %v188, %v189
    %v191 = vmax.f32 %v55, %v71
    %v192 = vrot.slane %v191, 4
    %v193 = vmax.f32 %v191, %v192
    %v194 = vrot.slane %v193, 2
    %v195 = vmax.f32 %v193, %v194
    %v196 = vrot.slane %v195, 1
    %v197 = vmax.f32 %v195, %v196
    %v198 = vmax.f32 %v56, %v72
    %v199 = vrot.slane %v198, 4
    %v200 = vmax.f32 %v198, %v199
    %v201 = vrot.slane %v200, 2
    %v202 = vmax.f32 %v200, %v201
    %v203 = vrot.slane %v202, 1
    %v204 = vmax.f32 %v202, %v203
    %v205 = vmax.f32 %v57, %v73
    %v206 = vrot.slane %v205, 4
    %v207 = vmax.f32 %v205, %v206
    %v208 = vrot.slane %v207, 2
    %v209 = vmax.f32 %v207, %v208
    %v210 = vrot.slane %v209, 1
    %v211 = vmax.f32 %v209, %v210
    %v212 = vmax.f32 %v58, %v74
    %v213 = vrot.slane %v212, 4
    %v214 = vmax.f32 %v212, %v213
    %v215 = vrot.slane %v214, 2
    %v216 = vmax.f32 %v214, %v215
    %v217 = vrot.slane %v216, 1
    %v218 = vmax.f32 %v216, %v217
    %v219 = vmax.f32 %v75, %v91
    %v220 = vrot.slane %v219, 4
    %v221 = vmax.f32 %v219, %v220
    %v222 = vrot.slane %v221, 2
    %v223 = vmax.f32 %v221, %v222
    %v224 = vrot.slane %v223, 1
    %v225 = vmax.f32 %v223, %v224
    %v226 = vmax.f32 %v76, %v92
    %v227 = vrot.slane %v226, 4
    %v228 = vmax.f32 %v226, %v227
    %v229 = vrot.slane %v228, 2
    %v230 = vmax.f32 %v228, %v229
    %v231 = vrot.slane %v230, 1
    %v232 = vmax.f32 %v230, %v231
    %v233 = vmax.f32 %v77, %v93
    %v234 = vrot.slane %v233, 4
    %v235 = vmax.f32 %v233, %v234
    %v236 = vrot.slane %v235, 2
    %v237 = vmax.f32 %v235, %v236
    %v238 = vrot.slane %v237, 1
    %v239 = vmax.f32 %v237, %v238
    %v240 = vmax.f32 %v78, %v94
    %v241 = vrot.slane %v240, 4
    %v242 = vmax.f32 %v240, %v241
    %v243 = vrot.slane %v242, 2
    %v244 = vmax.f32 %v242, %v243
    %v245 = vrot.slane %v244, 1
    %v246 = vmax.f32 %v244, %v245
    %v247 = vmax.f32 %v79, %v95
    %v248 = vrot.slane %v247, 4
    %v249 = vmax.f32 %v247, %v248
    %v250 = vrot.slane %v249, 2
    %v251 = vmax.f32 %v249, %v250
    %v252 = vrot.slane %v251, 1
    %v253 = vmax.f32 %v251, %v252
    %v254 = vmax.f32 %v80, %v96
    %v255 = vrot.slane %v254, 4
    %v256 = vmax.f32 %v254, %v255
    %v257 = vrot.slane %v256, 2
    %v258 = vmax.f32 %v256, %v257
    %v259 = vrot.slane %v258, 1
    %v260 = vmax.f32 %v258, %v259
    %v261 = vmax.f32 %v81, %v97
    %v262 = vrot.slane %v261, 4
    %v263 = vmax.f32 %v261, %v262
    %v264 = vrot.slane %v263, 2
    %v265 = vmax.f32 %v263, %v264
    %v266 = vrot.slane %v265, 1
    %v267 = vmax.f32 %v265, %v266
    %v268 = vmax.f32 %v82, %v98
    %v269 = vrot.slane %v268, 4
    %v270 = vmax.f32 %v268, %v269
    %v271 = vrot.slane %v270, 2
    %v272 = vmax.f32 %v270, %v271
    %v273 = vrot.slane %v272, 1
    %v274 = vmax.f32 %v272, %v273
    %v275 = vmax.f32 %v83, %v99
    %v276 = vrot.slane %v275, 4
    %v277 = vmax.f32 %v275, %v276
    %v278 = vrot.slane %v277, 2
    %v279 = vmax.f32 %v277, %v278
    %v280 = vrot.slane %v279, 1
    %v281 = vmax.f32 %v279, %v280
    %v282 = vmax.f32 %v84, %v100
    %v283 = vrot.slane %v282, 4
    %v284 = vmax.f32 %v282, %v283
    %v285 = vrot.slane %v284, 2
    %v286 = vmax.f32 %v284, %v285
    %v287 = vrot.slane %v286, 1
    %v288 = vmax.f32 %v286, %v287
    %v289 = vmax.f32 %v85, %v101
    %v290 = vrot.slane %v289, 4
    %v291 = vmax.f32 %v289, %v290
    %v292 = vrot.slane %v291, 2
    %v293 = vmax.f32 %v291, %v292
    %v294 = vrot.slane %v293, 1
    %v295 = vmax.f32 %v293, %v294
    %v296 = vmax.f32 %v86, %v102
    %v297 = vrot.slane %v296, 4
    %v298 = vmax.f32 %v296, %v297
    %v299 = vrot.slane %v298, 2
    %v300 = vmax.f32 %v298, %v299
    %v301 = vrot.slane %v300, 1
    %v302 = vmax.f32 %v300, %v301
    %v303 = vmax.f32 %v87, %v103
    %v304 = vrot.slane %v303, 4
    %v305 = vmax.f32 %v303, %v304
    %v306 = vrot.slane %v305, 2
    %v307 = vmax.f32 %v305, %v306
    %v308 = vrot.slane %v307, 1
    %v309 = vmax.f32 %v307, %v308
    %v310 = vmax.f32 %v88, %v104
    %v311 = vrot.slane %v310, 4
    %v312 = vmax.f32 %v310, %v311
    %v313 = vrot.slane %v312, 2
    %v314 = vmax.f32 %v312, %v313
    %v315 = vrot.slane %v314, 1
    %v316 = vmax.f32 %v314, %v315
    %v317 = vmax.f32 %v89, %v105
    %v318 = vrot.slane %v317, 4
    %v319 = vmax.f32 %v317, %v318
    %v320 = vrot.slane %v319, 2
    %v321 = vmax.f32 %v319, %v320
    %v322 = vrot.slane %v321, 1
    %v323 = vmax.f32 %v321, %v322
    %v324 = vmax.f32 %v90, %v106
    %v325 = vrot.slane %v324, 4
    %v326 = vmax.f32 %v324, %v325
    %v327 = vrot.slane %v326, 2
    %v328 = vmax.f32 %v326, %v327
    %v329 = vrot.slane %v328, 1
    %v330 = vmax.f32 %v328, %v329
    %v331 = vld [vmem:[#allocation5] sm:$0xff]
    %v332 = vld [vmem:[#allocation5 + $0x8] sm:$0xff]
    %v333 = vld [vmem:[#allocation5 + $0x10] sm:$0xff]
    %v334 = vld [vmem:[#allocation5 + $0x18] sm:$0xff]
    %v335 = vld [vmem:[#allocation5 + $0x20] sm:$0xff]
    %v336 = vld [vmem:[#allocation5 + $0x28] sm:$0xff]
    %v337 = vld [vmem:[#allocation5 + $0x30] sm:$0xff]
    %v338 = vld [vmem:[#allocation5 + $0x38] sm:$0xff]
    %v339 = vld [vmem:[#allocation5 + $0x40] sm:$0xff]
    %v340 = vld [vmem:[#allocation5 + $0x48] sm:$0xff]
    %v341 = vld [vmem:[#allocation5 + $0x50] sm:$0xff]
    %v342 = vld [vmem:[#allocation5 + $0x58] sm:$0xff]
    %v343 = vld [vmem:[#allocation5 + $0x60] sm:$0xff]
    %v344 = vld [vmem:[#allocation5 + $0x68] sm:$0xff]
    %v345 = vld [vmem:[#allocation5 + $0x70] sm:$0xff]
    %v346 = vld [vmem:[#allocation5 + $0x78] sm:$0xff]
    %v347 = vld [vmem:[#allocation5 + $0x80] sm:$0xff]
    %v348 = vld [vmem:[#allocation5 + $0x88] sm:$0xff]
    %v349 = vld [vmem:[#allocation5 + $0x90] sm:$0xff]
    %v350 = vld [vmem:[#allocation5 + $0x98] sm:$0xff]
    %v351 = vld [vmem:[#allocation5 + $0xa0] sm:$0xff]
    %v352 = vld [vmem:[#allocation5 + $0xa8] sm:$0xff]
    %v353 = vld [vmem:[#allocation5 + $0xb0] sm:$0xff]
    %v354 = vld [vmem:[#allocation5 + $0xb8] sm:$0xff]
    %v355 = vld [vmem:[#allocation5 + $0xc0] sm:$0xff]
    %v356 = vld [vmem:[#allocation5 + $0xc8] sm:$0xff]
    %v357 = vld [vmem:[#allocation5 + $0xd0] sm:$0xff]
    %v358 = vld [vmem:[#allocation5 + $0xd8] sm:$0xff]
    %v359 = vld [vmem:[#allocation5 + $0xe0] sm:$0xff]
    %v360 = vld [vmem:[#allocation5 + $0xe8] sm:$0xff]
    %v361 = vld [vmem:[#allocation5 + $0xf0] sm:$0xff]
    %v362 = vld [vmem:[#allocation5 + $0xf8] sm:$0xff]
    %v363 = vld [vmem:[#allocation5 + $0x100] sm:$0xff]
    %v364 = vld [vmem:[#allocation5 + $0x108] sm:$0xff]
    %v365 = vld [vmem:[#allocation5 + $0x110] sm:$0xff]
    %v366 = vld [vmem:[#allocation5 + $0x118] sm:$0xff]
    %v367 = vld [vmem:[#allocation5 + $0x120] sm:$0xff]
    %v368 = vld [vmem:[#allocation5 + $0x128] sm:$0xff]
    %v369 = vld [vmem:[#allocation5 + $0x130] sm:$0xff]
    %v370 = vld [vmem:[#allocation5 + $0x138] sm:$0xff]
    %v371 = vld [vmem:[#allocation5 + $0x140] sm:$0xff]
    %v372 = vld [vmem:[#allocation5 + $0x148] sm:$0xff]
    %v373 = vld [vmem:[#allocation5 + $0x150] sm:$0xff]
    %v374 = vld [vmem:[#allocation5 + $0x158] sm:$0xff]
    %v375 = vld [vmem:[#allocation5 + $0x160] sm:$0xff]
    %v376 = vld [vmem:[#allocation5 + $0x168] sm:$0xff]
    %v377 = vld [vmem:[#allocation5 + $0x170] sm:$0xff]
    %v378 = vld [vmem:[#allocation5 + $0x178] sm:$0xff]
    %v379 = vld [vmem:[#allocation5 + $0x180] sm:$0xff]
    %v380 = vld [vmem:[#allocation5 + $0x188] sm:$0xff]
    %v381 = vld [vmem:[#allocation5 + $0x190] sm:$0xff]
    %v382 = vld [vmem:[#allocation5 + $0x198] sm:$0xff]
    %v383 = vld [vmem:[#allocation5 + $0x1a0] sm:$0xff]
    %v384 = vld [vmem:[#allocation5 + $0x1a8] sm:$0xff]
    %v385 = vld [vmem:[#allocation5 + $0x1b0] sm:$0xff]
    %v386 = vld [vmem:[#allocation5 + $0x1b8] sm:$0xff]
    %v387 = vld [vmem:[#allocation5 + $0x1c0] sm:$0xff]
    %v388 = vld [vmem:[#allocation5 + $0x1c8] sm:$0xff]
    %v389 = vld [vmem:[#allocation5 + $0x1d0] sm:$0xff]
    %v390 = vld [vmem:[#allocation5 + $0x1d8] sm:$0xff]
    %v391 = vld [vmem:[#allocation5 + $0x1e0] sm:$0xff]
    %v392 = vld [vmem:[#allocation5 + $0x1e8] sm:$0xff]
    %v393 = vld [vmem:[#allocation5 + $0x1f0] sm:$0xff]
    %v394 = vld [vmem:[#allocation5 + $0x1f8] sm:$0xff]
    %v395 = vld [vmem:[#allocation5 + $0x200] sm:$0xff]
    %v396 = vld [vmem:[#allocation5 + $0x208] sm:$0xff]
    %v397 = vld [vmem:[#allocation5 + $0x210] sm:$0xff]
    %v398 = vld [vmem:[#allocation5 + $0x218] sm:$0xff]
    %v399 = vld [vmem:[#allocation5 + $0x220] sm:$0xff]
    %v400 = vld [vmem:[#allocation5 + $0x228] sm:$0xff]
    %v401 = vld [vmem:[#allocation5 + $0x230] sm:$0xff]
    %v402 = vld [vmem:[#allocation5 + $0x238] sm:$0xff]
    %v403 = vld [vmem:[#allocation5 + $0x240] sm:$0xff]
    %v404 = vld [vmem:[#allocation5 + $0x248] sm:$0xff]
    %v405 = vld [vmem:[#allocation5 + $0x250] sm:$0xff]
    %v406 = vld [vmem:[#allocation5 + $0x258] sm:$0xff]
    %v407 = vld [vmem:[#allocation5 + $0x260] sm:$0xff]
    %v408 = vld [vmem:[#allocation5 + $0x268] sm:$0xff]
    %v409 = vld [vmem:[#allocation5 + $0x270] sm:$0xff]
    %v410 = vld [vmem:[#allocation5 + $0x278] sm:$0xff]
    %v411 = vld [vmem:[#allocation5 + $0x280] sm:$0xff]
    %v412 = vld [vmem:[#allocation5 + $0x288] sm:$0xff]
    %v413 = vld [vmem:[#allocation5 + $0x290] sm:$0xff]
    %v414 = vld [vmem:[#allocation5 + $0x298] sm:$0xff]
    %v415 = vld [vmem:[#allocation5 + $0x2a0] sm:$0xff]
    %v416 = vld [vmem:[#allocation5 + $0x2a8] sm:$0xff]
    %v417 = vld [vmem:[#allocation5 + $0x2b0] sm:$0xff]
    %v418 = vld [vmem:[#allocation5 + $0x2b8] sm:$0xff]
    %v419 = vld [vmem:[#allocation5 + $0x2c0] sm:$0xff]
    %v420 = vld [vmem:[#allocation5 + $0x2c8] sm:$0xff]
    %v421 = vld [vmem:[#allocation5 + $0x2d0] sm:$0xff]
    %v422 = vld [vmem:[#allocation5 + $0x2d8] sm:$0xff]
    %v423 = vld [vmem:[#allocation5 + $0x2e0] sm:$0xff]
    %v424 = vld [vmem:[#allocation5 + $0x2e8] sm:$0xff]
    %v425 = vld [vmem:[#allocation5 + $0x2f0] sm:$0xff]
    %v426 = vld [vmem:[#allocation5 + $0x2f8] sm:$0xff]
    %v427 = vld [vmem:[#allocation5 + $0x300] sm:$0xff]
    %v428 = vld [vmem:[#allocation5 + $0x308] sm:$0xff]
    %v429 = vld [vmem:[#allocation5 + $0x310] sm:$0xff]
    %v430 = vld [vmem:[#allocation5 + $0x318] sm:$0xff]
    %v431 = vld [vmem:[#allocation5 + $0x320] sm:$0xff]
    %v432 = vld [vmem:[#allocation5 + $0x328] sm:$0xff]
    %v433 = vld [vmem:[#allocation5 + $0x330] sm:$0xff]
    %v434 = vld [vmem:[#allocation5 + $0x338] sm:$0xff]
    %v435 = vld [vmem:[#allocation5 + $0x340] sm:$0xff]
    %v436 = vld [vmem:[#allocation5 + $0x348] sm:$0xff]
    %v437 = vld [vmem:[#allocation5 + $0x350] sm:$0xff]
    %v438 = vld [vmem:[#allocation5 + $0x358] sm:$0xff]
    %v439 = vld [vmem:[#allocation5 + $0x360] sm:$0xff]
    %v440 = vld [vmem:[#allocation5 + $0x368] sm:$0xff]
    %v441 = vld [vmem:[#allocation5 + $0x370] sm:$0xff]
    %v442 = vld [vmem:[#allocation5 + $0x378] sm:$0xff]
    %v443 = vld [vmem:[#allocation5 + $0x380] sm:$0xff]
    %v444 = vld [vmem:[#allocation5 + $0x388] sm:$0xff]
    %v445 = vld [vmem:[#allocation5 + $0x390] sm:$0xff]
    %v446 = vld [vmem:[#allocation5 + $0x398] sm:$0xff]
    %v447 = vld [vmem:[#allocation5 + $0x3a0] sm:$0xff]
    %v448 = vld [vmem:[#allocation5 + $0x3a8] sm:$0xff]
    %v449 = vld [vmem:[#allocation5 + $0x3b0] sm:$0xff]
    %v450 = vld [vmem:[#allocation5 + $0x3b8] sm:$0xff]
    %v451 = vld [vmem:[#allocation5 + $0x3c0] sm:$0xff]
    %v452 = vld [vmem:[#allocation5 + $0x3c8] sm:$0xff]
    %v453 = vld [vmem:[#allocation5 + $0x3d0] sm:$0xff]
    %v454 = vld [vmem:[#allocation5 + $0x3d8] sm:$0xff]
    %v455 = vld [vmem:[#allocation5 + $0x3e0] sm:$0xff]
    %v456 = vld [vmem:[#allocation5 + $0x3e8] sm:$0xff]
    %v457 = vld [vmem:[#allocation5 + $0x3f0] sm:$0xff]
    %v458 = vld [vmem:[#allocation5 + $0x3f8] sm:$0xff]
    %v459 = vld [vmem:[#allocation5 + $0x400] sm:$0xff]
    %v460 = vld [vmem:[#allocation5 + $0x408] sm:$0xff]
    %v461 = vld [vmem:[#allocation5 + $0x410] sm:$0xff]
    %v462 = vld [vmem:[#allocation5 + $0x418] sm:$0xff]
    %v463 = vld [vmem:[#allocation5 + $0x420] sm:$0xff]
    %v464 = vld [vmem:[#allocation5 + $0x428] sm:$0xff]
    %v465 = vld [vmem:[#allocation5 + $0x430] sm:$0xff]
    %v466 = vld [vmem:[#allocation5 + $0x438] sm:$0xff]
    %v467 = vld [vmem:[#allocation5 + $0x440] sm:$0xff]
    %v468 = vld [vmem:[#allocation5 + $0x448] sm:$0xff]
    %v469 = vld [vmem:[#allocation5 + $0x450] sm:$0xff]
    %v470 = vld [vmem:[#allocation5 + $0x458] sm:$0xff]
    %v471 = vld [vmem:[#allocation5 + $0x460] sm:$0xff]
    %v472 = vld [vmem:[#allocation5 + $0x468] sm:$0xff]
    %v473 = vld [vmem:[#allocation5 + $0x470] sm:$0xff]
    %v474 = vld [vmem:[#allocation5 + $0x478] sm:$0xff]
    %v475 = vld [vmem:[#allocation5 + $0x480] sm:$0xff]
    %v476 = vld [vmem:[#allocation5 + $0x488] sm:$0xff]
    %v477 = vld [vmem:[#allocation5 + $0x490] sm:$0xff]
    %v478 = vld [vmem:[#allocation5 + $0x498] sm:$0xff]
    %v479 = vld [vmem:[#allocation5 + $0x4a0] sm:$0xff]
    %v480 = vld [vmem:[#allocation5 + $0x4a8] sm:$0xff]
    %v481 = vld [vmem:[#allocation5 + $0x4b0] sm:$0xff]
    %v482 = vld [vmem:[#allocation5 + $0x4b8] sm:$0xff]
    %v483 = vld [vmem:[#allocation5 + $0x4c0] sm:$0xff]
    %v484 = vld [vmem:[#allocation5 + $0x4c8] sm:$0xff]
    %v485 = vld [vmem:[#allocation5 + $0x4d0] sm:$0xff]
    %v486 = vld [vmem:[#allocation5 + $0x4d8] sm:$0xff]
    %v487 = vld [vmem:[#allocation5 + $0x4e0] sm:$0xff]
    %v488 = vld [vmem:[#allocation5 + $0x4e8] sm:$0xff]
    %v489 = vld [vmem:[#allocation5 + $0x4f0] sm:$0xff]
    %v490 = vld [vmem:[#allocation5 + $0x4f8] sm:$0xff]
    %v491 = vld [vmem:[#allocation5 + $0x500] sm:$0xff]
    %v492 = vld [vmem:[#allocation5 + $0x508] sm:$0xff]
    %v493 = vld [vmem:[#allocation5 + $0x510] sm:$0xff]
    %v494 = vld [vmem:[#allocation5 + $0x518] sm:$0xff]
    %v495 = vld [vmem:[#allocation5 + $0x520] sm:$0xff]
    %v496 = vld [vmem:[#allocation5 + $0x528] sm:$0xff]
    %v497 = vld [vmem:[#allocation5 + $0x530] sm:$0xff]
    %v498 = vld [vmem:[#allocation5 + $0x538] sm:$0xff]
    %v499 = vld [vmem:[#allocation5 + $0x540] sm:$0xff]
    %v500 = vld [vmem:[#allocation5 + $0x548] sm:$0xff]
    %v501 = vld [vmem:[#allocation5 + $0x550] sm:$0xff]
    %v502 = vld [vmem:[#allocation5 + $0x558] sm:$0xff]
    %v503 = vld [vmem:[#allocation5 + $0x560] sm:$0xff]
    %v504 = vld [vmem:[#allocation5 + $0x568] sm:$0xff]
    %v505 = vld [vmem:[#allocation5 + $0x570] sm:$0xff]
    %v506 = vld [vmem:[#allocation5 + $0x578] sm:$0xff]
    %v507 = vld [vmem:[#allocation5 + $0x580] sm:$0xff]
    %v508 = vld [vmem:[#allocation5 + $0x588] sm:$0xff]
    %v509 = vld [vmem:[#allocation5 + $0x590] sm:$0xff]
    %v510 = vld [vmem:[#allocation5 + $0x598] sm:$0xff]
    %v511 = vld [vmem:[#allocation5 + $0x5a0] sm:$0xff]
    %v512 = vld [vmem:[#allocation5 + $0x5a8] sm:$0xff]
    %v513 = vld [vmem:[#allocation5 + $0x5b0] sm:$0xff]
    %v514 = vld [vmem:[#allocation5 + $0x5b8] sm:$0xff]
    %v515 = vld [vmem:[#allocation5 + $0x5c0] sm:$0xff]
    %v516 = vld [vmem:[#allocation5 + $0x5c8] sm:$0xff]
    %v517 = vld [vmem:[#allocation5 + $0x5d0] sm:$0xff]
    %v518 = vld [vmem:[#allocation5 + $0x5d8] sm:$0xff]
    %v519 = vld [vmem:[#allocation5 + $0x5e0] sm:$0xff]
    %v520 = vld [vmem:[#allocation5 + $0x5e8] sm:$0xff]
    %v521 = vld [vmem:[#allocation5 + $0x5f0] sm:$0xff]
    %v522 = vld [vmem:[#allocation5 + $0x5f8] sm:$0xff]
    %v523 = vld [vmem:[#allocation5 + $0x600] sm:$0xff]
    %v524 = vld [vmem:[#allocation5 + $0x608] sm:$0xff]
    %v525 = vld [vmem:[#allocation5 + $0x610] sm:$0xff]
    %v526 = vld [vmem:[#allocation5 + $0x618] sm:$0xff]
    %v527 = vld [vmem:[#allocation5 + $0x620] sm:$0xff]
    %v528 = vld [vmem:[#allocation5 + $0x628] sm:$0xff]
    %v529 = vld [vmem:[#allocation5 + $0x630] sm:$0xff]
    %v530 = vld [vmem:[#allocation5 + $0x638] sm:$0xff]
    %v531 = vld [vmem:[#allocation5 + $0x640] sm:$0xff]
    %v532 = vld [vmem:[#allocation5 + $0x648] sm:$0xff]
    %v533 = vld [vmem:[#allocation5 + $0x650] sm:$0xff]
    %v534 = vld [vmem:[#allocation5 + $0x658] sm:$0xff]
    %v535 = vld [vmem:[#allocation5 + $0x660] sm:$0xff]
    %v536 = vld [vmem:[#allocation5 + $0x668] sm:$0xff]
    %v537 = vld [vmem:[#allocation5 + $0x670] sm:$0xff]
    %v538 = vld [vmem:[#allocation5 + $0x678] sm:$0xff]
    %v539 = vld [vmem:[#allocation5 + $0x680] sm:$0xff]
    %v540 = vld [vmem:[#allocation5 + $0x688] sm:$0xff]
    %v541 = vld [vmem:[#allocation5 + $0x690] sm:$0xff]
    %v542 = vld [vmem:[#allocation5 + $0x698] sm:$0xff]
    %v543 = vld [vmem:[#allocation5 + $0x6a0] sm:$0xff]
    %v544 = vld [vmem:[#allocation5 + $0x6a8] sm:$0xff]
    %v545 = vld [vmem:[#allocation5 + $0x6b0] sm:$0xff]
    %v546 = vld [vmem:[#allocation5 + $0x6b8] sm:$0xff]
    %v547 = vld [vmem:[#allocation5 + $0x6c0] sm:$0xff]
    %v548 = vld [vmem:[#allocation5 + $0x6c8] sm:$0xff]
    %v549 = vld [vmem:[#allocation5 + $0x6d0] sm:$0xff]
    %v550 = vld [vmem:[#allocation5 + $0x6d8] sm:$0xff]
    %v551 = vld [vmem:[#allocation5 + $0x6e0] sm:$0xff]
    %v552 = vld [vmem:[#allocation5 + $0x6e8] sm:$0xff]
    %v553 = vld [vmem:[#allocation5 + $0x6f0] sm:$0xff]
    %v554 = vld [vmem:[#allocation5 + $0x6f8] sm:$0xff]
    %v555 = vld [vmem:[#allocation5 + $0x700] sm:$0xff]
    %v556 = vld [vmem:[#allocation5 + $0x708] sm:$0xff]
    %v557 = vld [vmem:[#allocation5 + $0x710] sm:$0xff]
    %v558 = vld [vmem:[#allocation5 + $0x718] sm:$0xff]
    %v559 = vld [vmem:[#allocation5 + $0x720] sm:$0xff]
    %v560 = vld [vmem:[#allocation5 + $0x728] sm:$0xff]
    %v561 = vld [vmem:[#allocation5 + $0x730] sm:$0xff]
    %v562 = vld [vmem:[#allocation5 + $0x738] sm:$0xff]
    %v563 = vld [vmem:[#allocation5 + $0x740] sm:$0xff]
    %v564 = vld [vmem:[#allocation5 + $0x748] sm:$0xff]
    %v565 = vld [vmem:[#allocation5 + $0x750] sm:$0xff]
    %v566 = vld [vmem:[#allocation5 + $0x758] sm:$0xff]
    %v567 = vld [vmem:[#allocation5 + $0x760] sm:$0xff]
    %v568 = vld [vmem:[#allocation5 + $0x768] sm:$0xff]
    %v569 = vld [vmem:[#allocation5 + $0x770] sm:$0xff]
    %v570 = vld [vmem:[#allocation5 + $0x778] sm:$0xff]
    %v571 = vld [vmem:[#allocation5 + $0x780] sm:$0xff]
    %v572 = vld [vmem:[#allocation5 + $0x788] sm:$0xff]
    %v573 = vld [vmem:[#allocation5 + $0x790] sm:$0xff]
    %v574 = vld [vmem:[#allocation5 + $0x798] sm:$0xff]
    %v575 = vld [vmem:[#allocation5 + $0x7a0] sm:$0xff]
    %v576 = vld [vmem:[#allocation5 + $0x7a8] sm:$0xff]
    %v577 = vld [vmem:[#allocation5 + $0x7b0] sm:$0xff]
    %v578 = vld [vmem:[#allocation5 + $0x7b8] sm:$0xff]
    %v579 = vld [vmem:[#allocation5 + $0x7c0] sm:$0xff]
    %v580 = vld [vmem:[#allocation5 + $0x7c8] sm:$0xff]
    %v581 = vld [vmem:[#allocation5 + $0x7d0] sm:$0xff]
    %v582 = vld [vmem:[#allocation5 + $0x7d8] sm:$0xff]
    %v583 = vld [vmem:[#allocation5 + $0x7e0] sm:$0xff]
    %v584 = vld [vmem:[#allocation5 + $0x7e8] sm:$0xff]
    %v585 = vld [vmem:[#allocation5 + $0x7f0] sm:$0xff]
    %v586 = vld [vmem:[#allocation5 + $0x7f8] sm:$0xff]
    %v587 = vld [vmem:[%s2] sm:$0x1]
    %v589 = vlaneseq
    %v590 = vshrl.u32 %v589, 7
    %v591 = vsub.s32 0, %v590
    %v592 = vrot.slane %v587, %v591
    %vm626 = vcmask 1041409
    %v627 = vsel %vm626, %v225, %v113
    %v628 = vsel %vm626, %v232, %v120
    %v629 = vsel %vm626, %v239, %v127
    %v630 = vsel %vm626, %v246, %v134
    %v631 = vsel %vm626, %v253, %v141
    %v632 = vsel %vm626, %v260, %v148
    %v633 = vsel %vm626, %v267, %v155
    %v634 = vsel %vm626, %v274, %v162
    %v635 = vsel %vm626, %v281, %v169
    %v636 = vsel %vm626, %v288, %v176
    %v637 = vsel %vm626, %v295, %v183
    %v638 = vsel %vm626, %v302, %v190
    %v639 = vsel %vm626, %v309, %v197
    %v640 = vsel %vm626, %v316, %v204
    %v641 = vsel %vm626, %v323, %v211
    %v642 = vsel %vm626, %v330, %v218
    %659 = vmatprep.subr.mxu0 0.0
    %660 = vmatpush1.msra.mxu0 %v346
    %661 = vmatprep.subr.mxu0 0.0
    %662 = vmatpush1.msra.mxu0 %v345
    %663 = vmatprep.subr.mxu0 0.0
    %664 = vmatpush1.msra.mxu0 %v344
    %665 = vmatprep.subr.mxu0 0.0
    %666 = vmatpush1.msra.mxu0 %v343
    %667 = vmatprep.subr.mxu0 0.0
    %668 = vmatpush1.msra.mxu0 %v342
    %669 = vmatprep.subr.mxu0 0.0
    %670 = vmatpush1.msra.mxu0 %v341
    %671 = vmatprep.subr.mxu0 0.0
    %672 = vmatpush1.msra.mxu0 %v340
    %673 = vmatprep.subr.mxu0 0.0
    %674 = vmatpush1.msra.mxu0 %v339
    %675 = vmatprep.subr.mxu0 0.0
    %676 = vmatpush1.msra.mxu0 %v338
    %677 = vmatprep.subr.mxu0 0.0
    %678 = vmatpush1.msra.mxu0 %v337
    %679 = vmatprep.subr.mxu0 0.0
    %680 = vmatpush1.msra.mxu0 %v336
    %681 = vmatprep.subr.mxu0 0.0
    %682 = vmatpush1.msra.mxu0 %v335
    %683 = vmatprep.subr.mxu0 0.0
    %684 = vmatpush1.msra.mxu0 %v334
    %685 = vmatprep.subr.mxu0 0.0
    %686 = vmatpush1.msra.mxu0 %v333
    %687 = vmatprep.subr.mxu0 0.0
    %688 = vmatpush1.msra.mxu0 %v332
    %689 = vmatprep.subr.mxu0 0.0
    %690 = vmatpush1.msra.mxu0 %v331
    %691 = vmatprep.subr.mxu0 0.0
    %692 = vmatpush2.msra.mxu0 %v362
    %693 = vmatprep.subr.mxu0 0.0
    %694 = vmatpush2.msra.mxu0 %v361
    %695 = vmatprep.subr.mxu0 0.0
    %696 = vmatpush2.msra.mxu0 %v360
    %697 = vmatprep.subr.mxu0 0.0
    %698 = vmatpush2.msra.mxu0 %v359
    %699 = vmatprep.subr.mxu0 0.0
    %700 = vmatpush2.msra.mxu0 %v358
    %701 = vmatprep.subr.mxu0 0.0
    %702 = vmatpush2.msra.mxu0 %v357
    %703 = vmatprep.subr.mxu0 0.0
    %704 = vmatpush2.msra.mxu0 %v356
    %705 = vmatprep.subr.mxu0 0.0
    %706 = vmatpush2.msra.mxu0 %v355
    %707 = vmatprep.subr.mxu0 0.0
    %708 = vmatpush2.msra.mxu0 %v354
    %709 = vmatprep.subr.mxu0 0.0
    %710 = vmatpush2.msra.mxu0 %v353
    %711 = vmatprep.subr.mxu0 0.0
    %712 = vmatpush2.msra.mxu0 %v352
    %713 = vmatprep.subr.mxu0 0.0
    %714 = vmatpush2.msra.mxu0 %v351
    %715 = vmatprep.subr.mxu0 0.0
    %716 = vmatpush2.msra.mxu0 %v350
    %717 = vmatprep.subr.mxu0 0.0
    %718 = vmatpush2.msra.mxu0 %v349
    %719 = vmatprep.subr.mxu0 0.0
    %720 = vmatpush2.msra.mxu0 %v348
    %721 = vmatprep.subr.mxu0 0.0
    %722 = vmatpush2.msra.mxu0 %v347
    %723 = vmatprep.mubr.f32.mxu0 %v628
    %724 = vmatmul.mubr.f32.gmra.mxu0 %v627
    %v725 = vpop.f32.mrf.mxu0
    %v726 = vadd.f32 %v592, %v725
    %v727 = vpop.f32.mrf.mxu0
    %728 = vdwg.mxu0
    %729 = vmatprep.subr.mxu0 0.0
    %730 = vmatpush1.msra.mxu0 %v378
    %731 = vmatprep.subr.mxu0 0.0
    %732 = vmatpush1.msra.mxu0 %v377
    %733 = vmatprep.subr.mxu0 0.0
    %734 = vmatpush1.msra.mxu0 %v376
    %735 = vmatprep.subr.mxu0 0.0
    %736 = vmatpush1.msra.mxu0 %v375
    %737 = vmatprep.subr.mxu0 0.0
    %738 = vmatpush1.msra.mxu0 %v374
    %739 = vmatprep.subr.mxu0 0.0
    %740 = vmatpush1.msra.mxu0 %v373
    %741 = vmatprep.subr.mxu0 0.0
    %742 = vmatpush1.msra.mxu0 %v372
    %743 = vmatprep.subr.mxu0 0.0
    %744 = vmatpush1.msra.mxu0 %v371
    %745 = vmatprep.subr.mxu0 0.0
    %746 = vmatpush1.msra.mxu0 %v370
    %747 = vmatprep.subr.mxu0 0.0
    %748 = vmatpush1.msra.mxu0 %v369
    %749 = vmatprep.subr.mxu0 0.0
    %750 = vmatpush1.msra.mxu0 %v368
    %751 = vmatprep.subr.mxu0 0.0
    %752 = vmatpush1.msra.mxu0 %v367
    %753 = vmatprep.subr.mxu0 0.0
    %754 = vmatpush1.msra.mxu0 %v366
    %755 = vmatprep.subr.mxu0 0.0
    %756 = vmatpush1.msra.mxu0 %v365
    %757 = vmatprep.subr.mxu0 0.0
    %758 = vmatpush1.msra.mxu0 %v364
    %759 = vmatprep.subr.mxu0 0.0
    %760 = vmatpush1.msra.mxu0 %v363
    %761 = vmatprep.subr.mxu0 0.0
    %762 = vmatpush2.msra.mxu0 %v394
    %763 = vmatprep.subr.mxu0 0.0
    %764 = vmatpush2.msra.mxu0 %v393
    %765 = vmatprep.subr.mxu0 0.0
    %766 = vmatpush2.msra.mxu0 %v392
    %767 = vmatprep.subr.mxu0 0.0
    %768 = vmatpush2.msra.mxu0 %v391
    %769 = vmatprep.subr.mxu0 0.0
    %770 = vmatpush2.msra.mxu0 %v390
    %771 = vmatprep.subr.mxu0 0.0
    %772 = vmatpush2.msra.mxu0 %v389
    %773 = vmatprep.subr.mxu0 0.0
    %774 = vmatpush2.msra.mxu0 %v388
    %775 = vmatprep.subr.mxu0 0.0
    %776 = vmatpush2.msra.mxu0 %v387
    %777 = vmatprep.subr.mxu0 0.0
    %778 = vmatpush2.msra.mxu0 %v386
    %779 = vmatprep.subr.mxu0 0.0
    %780 = vmatpush2.msra.mxu0 %v385
    %781 = vmatprep.subr.mxu0 0.0
    %782 = vmatpush2.msra.mxu0 %v384
    %783 = vmatprep.subr.mxu0 0.0
    %784 = vmatpush2.msra.mxu0 %v383
    %785 = vmatprep.subr.mxu0 0.0
    %786 = vmatpush2.msra.mxu0 %v382
    %787 = vmatprep.subr.mxu0 0.0
    %788 = vmatpush2.msra.mxu0 %v381
    %789 = vmatprep.subr.mxu0 0.0
    %790 = vmatpush2.msra.mxu0 %v380
    %791 = vmatprep.subr.mxu0 0.0
    %792 = vmatpush2.msra.mxu0 %v379
    %793 = vmatprep.mubr.f32.mxu0 %v630
    %794 = vmatmul.mubr.f32.gmra.mxu0 %v629
    %v795 = vpop.f32.mrf.mxu0
    %v796 = vadd.f32 %v726, %v795
    %v797 = vpop.f32.mrf.mxu0
    %798 = vdwg.mxu0
    %799 = vmatprep.subr.mxu0 0.0
    %800 = vmatpush1.msra.mxu0 %v410
    %801 = vmatprep.subr.mxu0 0.0
    %802 = vmatpush1.msra.mxu0 %v409
    %803 = vmatprep.subr.mxu0 0.0
    %804 = vmatpush1.msra.mxu0 %v408
    %805 = vmatprep.subr.mxu0 0.0
    %806 = vmatpush1.msra.mxu0 %v407
    %807 = vmatprep.subr.mxu0 0.0
    %808 = vmatpush1.msra.mxu0 %v406
    %809 = vmatprep.subr.mxu0 0.0
    %810 = vmatpush1.msra.mxu0 %v405
    %811 = vmatprep.subr.mxu0 0.0
    %812 = vmatpush1.msra.mxu0 %v404
    %813 = vmatprep.subr.mxu0 0.0
    %814 = vmatpush1.msra.mxu0 %v403
    %815 = vmatprep.subr.mxu0 0.0
    %816 = vmatpush1.msra.mxu0 %v402
    %817 = vmatprep.subr.mxu0 0.0
    %818 = vmatpush1.msra.mxu0 %v401
    %819 = vmatprep.subr.mxu0 0.0
    %820 = vmatpush1.msra.mxu0 %v400
    %821 = vmatprep.subr.mxu0 0.0
    %822 = vmatpush1.msra.mxu0 %v399
    %823 = vmatprep.subr.mxu0 0.0
    %824 = vmatpush1.msra.mxu0 %v398
    %825 = vmatprep.subr.mxu0 0.0
    %826 = vmatpush1.msra.mxu0 %v397
    %827 = vmatprep.subr.mxu0 0.0
    %828 = vmatpush1.msra.mxu0 %v396
    %829 = vmatprep.subr.mxu0 0.0
    %830 = vmatpush1.msra.mxu0 %v395
    %831 = vmatprep.subr.mxu0 0.0
    %832 = vmatpush2.msra.mxu0 %v426
    %833 = vmatprep.subr.mxu0 0.0
    %834 = vmatpush2.msra.mxu0 %v425
    %835 = vmatprep.subr.mxu0 0.0
    %836 = vmatpush2.msra.mxu0 %v424
    %837 = vmatprep.subr.mxu0 0.0
    %838 = vmatpush2.msra.mxu0 %v423
    %839 = vmatprep.subr.mxu0 0.0
    %840 = vmatpush2.msra.mxu0 %v422
    %841 = vmatprep.subr.mxu0 0.0
    %842 = vmatpush2.msra.mxu0 %v421
    %843 = vmatprep.subr.mxu0 0.0
    %844 = vmatpush2.msra.mxu0 %v420
    %845 = vmatprep.subr.mxu0 0.0
    %846 = vmatpush2.msra.mxu0 %v419
    %847 = vmatprep.subr.mxu0 0.0
    %848 = vmatpush2.msra.mxu0 %v418
    %849 = vmatprep.subr.mxu0 0.0
    %850 = vmatpush2.msra.mxu0 %v417
    %851 = vmatprep.subr.mxu0 0.0
    %852 = vmatpush2.msra.mxu0 %v416
    %853 = vmatprep.subr.mxu0 0.0
    %854 = vmatpush2.msra.mxu0 %v415
    %855 = vmatprep.subr.mxu0 0.0
    %856 = vmatpush2.msra.mxu0 %v414
    %857 = vmatprep.subr.mxu0 0.0
    %858 = vmatpush2.msra.mxu0 %v413
    %859 = vmatprep.subr.mxu0 0.0
    %860 = vmatpush2.msra.mxu0 %v412
    %861 = vmatprep.subr.mxu0 0.0
    %862 = vmatpush2.msra.mxu0 %v411
    %863 = vmatprep.mubr.f32.mxu0 %v632
    %864 = vmatmul.mubr.f32.gmra.mxu0 %v631
    %v865 = vpop.f32.mrf.mxu0
    %v866 = vadd.f32 %v796, %v865
    %v867 = vpop.f32.mrf.mxu0
    %868 = vdwg.mxu0
    %869 = vmatprep.subr.mxu0 0.0
    %870 = vmatpush1.msra.mxu0 %v442
    %871 = vmatprep.subr.mxu0 0.0
    %872 = vmatpush1.msra.mxu0 %v441
    %873 = vmatprep.subr.mxu0 0.0
    %874 = vmatpush1.msra.mxu0 %v440
    %875 = vmatprep.subr.mxu0 0.0
    %876 = vmatpush1.msra.mxu0 %v439
    %877 = vmatprep.subr.mxu0 0.0
    %878 = vmatpush1.msra.mxu0 %v438
    %879 = vmatprep.subr.mxu0 0.0
    %880 = vmatpush1.msra.mxu0 %v437
    %881 = vmatprep.subr.mxu0 0.0
    %882 = vmatpush1.msra.mxu0 %v436
    %883 = vmatprep.subr.mxu0 0.0
    %884 = vmatpush1.msra.mxu0 %v435
    %885 = vmatprep.subr.mxu0 0.0
    %886 = vmatpush1.msra.mxu0 %v434
    %887 = vmatprep.subr.mxu0 0.0
    %888 = vmatpush1.msra.mxu0 %v433
    %889 = vmatprep.subr.mxu0 0.0
    %890 = vmatpush1.msra.mxu0 %v432
    %891 = vmatprep.subr.mxu0 0.0
    %892 = vmatpush1.msra.mxu0 %v431
    %893 = vmatprep.subr.mxu0 0.0
    %894 = vmatpush1.msra.mxu0 %v430
    %895 = vmatprep.subr.mxu0 0.0
    %896 = vmatpush1.msra.mxu0 %v429
    %897 = vmatprep.subr.mxu0 0.0
    %898 = vmatpush1.msra.mxu0 %v428
    %899 = vmatprep.subr.mxu0 0.0
    %900 = vmatpush1.msra.mxu0 %v427
    %901 = vmatprep.subr.mxu0 0.0
    %902 = vmatpush2.msra.mxu0 %v458
    %903 = vmatprep.subr.mxu0 0.0
    %904 = vmatpush2.msra.mxu0 %v457
    %905 = vmatprep.subr.mxu0 0.0
    %906 = vmatpush2.msra.mxu0 %v456
    %907 = vmatprep.subr.mxu0 0.0
    %908 = vmatpush2.msra.mxu0 %v455
    %909 = vmatprep.subr.mxu0 0.0
    %910 = vmatpush2.msra.mxu0 %v454
    %911 = vmatprep.subr.mxu0 0.0
    %912 = vmatpush2.msra.mxu0 %v453
    %913 = vmatprep.subr.mxu0 0.0
    %914 = vmatpush2.msra.mxu0 %v452
    %915 = vmatprep.subr.mxu0 0.0
    %916 = vmatpush2.msra.mxu0 %v451
    %917 = vmatprep.subr.mxu0 0.0
    %918 = vmatpush2.msra.mxu0 %v450
    %919 = vmatprep.subr.mxu0 0.0
    %920 = vmatpush2.msra.mxu0 %v449
    %921 = vmatprep.subr.mxu0 0.0
    %922 = vmatpush2.msra.mxu0 %v448
    %923 = vmatprep.subr.mxu0 0.0
    %924 = vmatpush2.msra.mxu0 %v447
    %925 = vmatprep.subr.mxu0 0.0
    %926 = vmatpush2.msra.mxu0 %v446
    %927 = vmatprep.subr.mxu0 0.0
    %928 = vmatpush2.msra.mxu0 %v445
    %929 = vmatprep.subr.mxu0 0.0
    %930 = vmatpush2.msra.mxu0 %v444
    %931 = vmatprep.subr.mxu0 0.0
    %932 = vmatpush2.msra.mxu0 %v443
    %933 = vmatprep.mubr.f32.mxu0 %v634
    %934 = vmatmul.mubr.f32.gmra.mxu0 %v633
    %v935 = vpop.f32.mrf.mxu0
    %v936 = vadd.f32 %v866, %v935
    %v937 = vpop.f32.mrf.mxu0
    %938 = vdwg.mxu0
    %939 = vmatprep.subr.mxu0 0.0
    %940 = vmatpush1.msra.mxu0 %v474
    %941 = vmatprep.subr.mxu0 0.0
    %942 = vmatpush1.msra.mxu0 %v473
    %943 = vmatprep.subr.mxu0 0.0
    %944 = vmatpush1.msra.mxu0 %v472
    %945 = vmatprep.subr.mxu0 0.0
    %946 = vmatpush1.msra.mxu0 %v471
    %947 = vmatprep.subr.mxu0 0.0
    %948 = vmatpush1.msra.mxu0 %v470
    %949 = vmatprep.subr.mxu0 0.0
    %950 = vmatpush1.msra.mxu0 %v469
    %951 = vmatprep.subr.mxu0 0.0
    %952 = vmatpush1.msra.mxu0 %v468
    %953 = vmatprep.subr.mxu0 0.0
    %954 = vmatpush1.msra.mxu0 %v467
    %955 = vmatprep.subr.mxu0 0.0
    %956 = vmatpush1.msra.mxu0 %v466
    %957 = vmatprep.subr.mxu0 0.0
    %958 = vmatpush1.msra.mxu0 %v465
    %959 = vmatprep.subr.mxu0 0.0
    %960 = vmatpush1.msra.mxu0 %v464
    %961 = vmatprep.subr.mxu0 0.0
    %962 = vmatpush1.msra.mxu0 %v463
    %963 = vmatprep.subr.mxu0 0.0
    %964 = vmatpush1.msra.mxu0 %v462
    %965 = vmatprep.subr.mxu0 0.0
    %966 = vmatpush1.msra.mxu0 %v461
    %967 = vmatprep.subr.mxu0 0.0
    %968 = vmatpush1.msra.mxu0 %v460
    %969 = vmatprep.subr.mxu0 0.0
    %970 = vmatpush1.msra.mxu0 %v459
    %971 = vmatprep.subr.mxu0 0.0
    %972 = vmatpush2.msra.mxu0 %v490
    %973 = vmatprep.subr.mxu0 0.0
    %974 = vmatpush2.msra.mxu0 %v489
    %975 = vmatprep.subr.mxu0 0.0
    %976 = vmatpush2.msra.mxu0 %v488
    %977 = vmatprep.subr.mxu0 0.0
    %978 = vmatpush2.msra.mxu0 %v487
    %979 = vmatprep.subr.mxu0 0.0
    %980 = vmatpush2.msra.mxu0 %v486
    %981 = vmatprep.subr.mxu0 0.0
    %982 = vmatpush2.msra.mxu0 %v485
    %983 = vmatprep.subr.mxu0 0.0
    %984 = vmatpush2.msra.mxu0 %v484
    %985 = vmatprep.subr.mxu0 0.0
    %986 = vmatpush2.msra.mxu0 %v483
    %987 = vmatprep.subr.mxu0 0.0
    %988 = vmatpush2.msra.mxu0 %v482
    %989 = vmatprep.subr.mxu0 0.0
    %990 = vmatpush2.msra.mxu0 %v481
    %991 = vmatprep.subr.mxu0 0.0
    %992 = vmatpush2.msra.mxu0 %v480
    %993 = vmatprep.subr.mxu0 0.0
    %994 = vmatpush2.msra.mxu0 %v479
    %995 = vmatprep.subr.mxu0 0.0
    %996 = vmatpush2.msra.mxu0 %v478
    %997 = vmatprep.subr.mxu0 0.0
    %998 = vmatpush2.msra.mxu0 %v477
    %999 = vmatprep.subr.mxu0 0.0
    %1000 = vmatpush2.msra.mxu0 %v476
    %1001 = vmatprep.subr.mxu0 0.0
    %1002 = vmatpush2.msra.mxu0 %v475
    %1003 = vmatprep.mubr.f32.mxu0 %v636
    %1004 = vmatmul.mubr.f32.gmra.mxu0 %v635
    %v1005 = vpop.f32.mrf.mxu0
    %v1006 = vadd.f32 %v936, %v1005
    %v1007 = vpop.f32.mrf.mxu0
    %1008 = vdwg.mxu0
    %1009 = vmatprep.subr.mxu0 0.0
    %1010 = vmatpush1.msra.mxu0 %v506
    %1011 = vmatprep.subr.mxu0 0.0
    %1012 = vmatpush1.msra.mxu0 %v505
    %1013 = vmatprep.subr.mxu0 0.0
    %1014 = vmatpush1.msra.mxu0 %v504
    %1015 = vmatprep.subr.mxu0 0.0
    %1016 = vmatpush1.msra.mxu0 %v503
    %1017 = vmatprep.subr.mxu0 0.0
    %1018 = vmatpush1.msra.mxu0 %v502
    %1019 = vmatprep.subr.mxu0 0.0
    %1020 = vmatpush1.msra.mxu0 %v501
    %1021 = vmatprep.subr.mxu0 0.0
    %1022 = vmatpush1.msra.mxu0 %v500
    %1023 = vmatprep.subr.mxu0 0.0
    %1024 = vmatpush1.msra.mxu0 %v499
    %1025 = vmatprep.subr.mxu0 0.0
    %1026 = vmatpush1.msra.mxu0 %v498
    %1027 = vmatprep.subr.mxu0 0.0
    %1028 = vmatpush1.msra.mxu0 %v497
    %1029 = vmatprep.subr.mxu0 0.0
    %1030 = vmatpush1.msra.mxu0 %v496
    %1031 = vmatprep.subr.mxu0 0.0
    %1032 = vmatpush1.msra.mxu0 %v495
    %1033 = vmatprep.subr.mxu0 0.0
    %1034 = vmatpush1.msra.mxu0 %v494
    %1035 = vmatprep.subr.mxu0 0.0
    %1036 = vmatpush1.msra.mxu0 %v493
    %1037 = vmatprep.subr.mxu0 0.0
    %1038 = vmatpush1.msra.mxu0 %v492
    %1039 = vmatprep.subr.mxu0 0.0
    %1040 = vmatpush1.msra.mxu0 %v491
    %1041 = vmatprep.subr.mxu0 0.0
    %1042 = vmatpush2.msra.mxu0 %v522
    %1043 = vmatprep.subr.mxu0 0.0
    %1044 = vmatpush2.msra.mxu0 %v521
    %1045 = vmatprep.subr.mxu0 0.0
    %1046 = vmatpush2.msra.mxu0 %v520
    %1047 = vmatprep.subr.mxu0 0.0
    %1048 = vmatpush2.msra.mxu0 %v519
    %1049 = vmatprep.subr.mxu0 0.0
    %1050 = vmatpush2.msra.mxu0 %v518
    %1051 = vmatprep.subr.mxu0 0.0
    %1052 = vmatpush2.msra.mxu0 %v517
    %1053 = vmatprep.subr.mxu0 0.0
    %1054 = vmatpush2.msra.mxu0 %v516
    %1055 = vmatprep.subr.mxu0 0.0
    %1056 = vmatpush2.msra.mxu0 %v515
    %1057 = vmatprep.subr.mxu0 0.0
    %1058 = vmatpush2.msra.mxu0 %v514
    %1059 = vmatprep.subr.mxu0 0.0
    %1060 = vmatpush2.msra.mxu0 %v513
    %1061 = vmatprep.subr.mxu0 0.0
    %1062 = vmatpush2.msra.mxu0 %v512
    %1063 = vmatprep.subr.mxu0 0.0
    %1064 = vmatpush2.msra.mxu0 %v511
    %1065 = vmatprep.subr.mxu0 0.0
    %1066 = vmatpush2.msra.mxu0 %v510
    %1067 = vmatprep.subr.mxu0 0.0
    %1068 = vmatpush2.msra.mxu0 %v509
    %1069 = vmatprep.subr.mxu0 0.0
    %1070 = vmatpush2.msra.mxu0 %v508
    %1071 = vmatprep.subr.mxu0 0.0
    %1072 = vmatpush2.msra.mxu0 %v507
    %1073 = vmatprep.mubr.f32.mxu0 %v638
    %1074 = vmatmul.mubr.f32.gmra.mxu0 %v637
    %v1075 = vpop.f32.mrf.mxu0
    %v1076 = vadd.f32 %v1006, %v1075
    %v1077 = vpop.f32.mrf.mxu0
    %1078 = vdwg.mxu0
    %1079 = vmatprep.subr.mxu0 0.0
    %1080 = vmatpush1.msra.mxu0 %v538
    %1081 = vmatprep.subr.mxu0 0.0
    %1082 = vmatpush1.msra.mxu0 %v537
    %1083 = vmatprep.subr.mxu0 0.0
    %1084 = vmatpush1.msra.mxu0 %v536
    %1085 = vmatprep.subr.mxu0 0.0
    %1086 = vmatpush1.msra.mxu0 %v535
    %1087 = vmatprep.subr.mxu0 0.0
    %1088 = vmatpush1.msra.mxu0 %v534
    %1089 = vmatprep.subr.mxu0 0.0
    %1090 = vmatpush1.msra.mxu0 %v533
    %1091 = vmatprep.subr.mxu0 0.0
    %1092 = vmatpush1.msra.mxu0 %v532
    %1093 = vmatprep.subr.mxu0 0.0
    %1094 = vmatpush1.msra.mxu0 %v531
    %1095 = vmatprep.subr.mxu0 0.0
    %1096 = vmatpush1.msra.mxu0 %v530
    %1097 = vmatprep.subr.mxu0 0.0
    %1098 = vmatpush1.msra.mxu0 %v529
    %1099 = vmatprep.subr.mxu0 0.0
    %1100 = vmatpush1.msra.mxu0 %v528
    %1101 = vmatprep.subr.mxu0 0.0
    %1102 = vmatpush1.msra.mxu0 %v527
    %1103 = vmatprep.subr.mxu0 0.0
    %1104 = vmatpush1.msra.mxu0 %v526
    %1105 = vmatprep.subr.mxu0 0.0
    %1106 = vmatpush1.msra.mxu0 %v525
    %1107 = vmatprep.subr.mxu0 0.0
    %1108 = vmatpush1.msra.mxu0 %v524
    %1109 = vmatprep.subr.mxu0 0.0
    %1110 = vmatpush1.msra.mxu0 %v523
    %1111 = vmatprep.subr.mxu0 0.0
    %1112 = vmatpush2.msra.mxu0 %v554
    %1113 = vmatprep.subr.mxu0 0.0
    %1114 = vmatpush2.msra.mxu0 %v553
    %1115 = vmatprep.subr.mxu0 0.0
    %1116 = vmatpush2.msra.mxu0 %v552
    %1117 = vmatprep.subr.mxu0 0.0
    %1118 = vmatpush2.msra.mxu0 %v551
    %1119 = vmatprep.subr.mxu0 0.0
    %1120 = vmatpush2.msra.mxu0 %v550
    %1121 = vmatprep.subr.mxu0 0.0
    %1122 = vmatpush2.msra.mxu0 %v549
    %1123 = vmatprep.subr.mxu0 0.0
    %1124 = vmatpush2.msra.mxu0 %v548
    %1125 = vmatprep.subr.mxu0 0.0
    %1126 = vmatpush2.msra.mxu0 %v547
    %1127 = vmatprep.subr.mxu0 0.0
    %1128 = vmatpush2.msra.mxu0 %v546
    %1129 = vmatprep.subr.mxu0 0.0
    %1130 = vmatpush2.msra.mxu0 %v545
    %1131 = vmatprep.subr.mxu0 0.0
    %1132 = vmatpush2.msra.mxu0 %v544
    %1133 = vmatprep.subr.mxu0 0.0
    %1134 = vmatpush2.msra.mxu0 %v543
    %1135 = vmatprep.subr.mxu0 0.0
    %1136 = vmatpush2.msra.mxu0 %v542
    %1137 = vmatprep.subr.mxu0 0.0
    %1138 = vmatpush2.msra.mxu0 %v541
    %1139 = vmatprep.subr.mxu0 0.0
    %1140 = vmatpush2.msra.mxu0 %v540
    %1141 = vmatprep.subr.mxu0 0.0
    %1142 = vmatpush2.msra.mxu0 %v539
    %1143 = vmatprep.mubr.f32.mxu0 %v640
    %1144 = vmatmul.mubr.f32.gmra.mxu0 %v639
    %v1145 = vpop.f32.mrf.mxu0
    %v1146 = vadd.f32 %v1076, %v1145
    %v1147 = vpop.f32.mrf.mxu0
    %1148 = vdwg.mxu0
    %1149 = vmatprep.subr.mxu0 0.0
    %1150 = vmatpush1.msra.mxu0 %v570
    %1151 = vmatprep.subr.mxu0 0.0
    %1152 = vmatpush1.msra.mxu0 %v569
    %1153 = vmatprep.subr.mxu0 0.0
    %1154 = vmatpush1.msra.mxu0 %v568
    %1155 = vmatprep.subr.mxu0 0.0
    %1156 = vmatpush1.msra.mxu0 %v567
    %1157 = vmatprep.subr.mxu0 0.0
    %1158 = vmatpush1.msra.mxu0 %v566
    %1159 = vmatprep.subr.mxu0 0.0
    %1160 = vmatpush1.msra.mxu0 %v565
    %1161 = vmatprep.subr.mxu0 0.0
    %1162 = vmatpush1.msra.mxu0 %v564
    %1163 = vmatprep.subr.mxu0 0.0
    %1164 = vmatpush1.msra.mxu0 %v563
    %1165 = vmatprep.subr.mxu0 0.0
    %1166 = vmatpush1.msra.mxu0 %v562
    %1167 = vmatprep.subr.mxu0 0.0
    %1168 = vmatpush1.msra.mxu0 %v561
    %1169 = vmatprep.subr.mxu0 0.0
    %1170 = vmatpush1.msra.mxu0 %v560
    %1171 = vmatprep.subr.mxu0 0.0
    %1172 = vmatpush1.msra.mxu0 %v559
    %1173 = vmatprep.subr.mxu0 0.0
    %1174 = vmatpush1.msra.mxu0 %v558
    %1175 = vmatprep.subr.mxu0 0.0
    %1176 = vmatpush1.msra.mxu0 %v557
    %1177 = vmatprep.subr.mxu0 0.0
    %1178 = vmatpush1.msra.mxu0 %v556
    %1179 = vmatprep.subr.mxu0 0.0
    %1180 = vmatpush1.msra.mxu0 %v555
    %1181 = vmatprep.subr.mxu0 0.0
    %1182 = vmatpush2.msra.mxu0 %v586
    %1183 = vmatprep.subr.mxu0 0.0
    %1184 = vmatpush2.msra.mxu0 %v585
    %1185 = vmatprep.subr.mxu0 0.0
    %1186 = vmatpush2.msra.mxu0 %v584
    %1187 = vmatprep.subr.mxu0 0.0
    %1188 = vmatpush2.msra.mxu0 %v583
    %1189 = vmatprep.subr.mxu0 0.0
    %1190 = vmatpush2.msra.mxu0 %v582
    %1191 = vmatprep.subr.mxu0 0.0
    %1192 = vmatpush2.msra.mxu0 %v581
    %1193 = vmatprep.subr.mxu0 0.0
    %1194 = vmatpush2.msra.mxu0 %v580
    %1195 = vmatprep.subr.mxu0 0.0
    %1196 = vmatpush2.msra.mxu0 %v579
    %1197 = vmatprep.subr.mxu0 0.0
    %1198 = vmatpush2.msra.mxu0 %v578
    %1199 = vmatprep.subr.mxu0 0.0
    %1200 = vmatpush2.msra.mxu0 %v577
    %1201 = vmatprep.subr.mxu0 0.0
    %1202 = vmatpush2.msra.mxu0 %v576
    %1203 = vmatprep.subr.mxu0 0.0
    %1204 = vmatpush2.msra.mxu0 %v575
    %1205 = vmatprep.subr.mxu0 0.0
    %1206 = vmatpush2.msra.mxu0 %v574
    %1207 = vmatprep.subr.mxu0 0.0
    %1208 = vmatpush2.msra.mxu0 %v573
    %1209 = vmatprep.subr.mxu0 0.0
    %1210 = vmatpush2.msra.mxu0 %v572
    %1211 = vmatprep.subr.mxu0 0.0
    %1212 = vmatpush2.msra.mxu0 %v571
    %1213 = vmatprep.mubr.f32.mxu0 %v642
    %1214 = vmatmul.mubr.f32.gmra.mxu0 %v641
    %v1215 = vpop.f32.mrf.mxu0
    %v1216 = vadd.f32 %v1146, %v1215
    %v1217 = vpop.f32.mrf.mxu0
    %1218 = vdwg.mxu0
    %v1219 = vmul.f32 %v1216, %v1216
    %vm1220 = vcmask 1041408
    %v1221 = vsel %vm1220, %v1219, 0.0
    %1222 = vadd.xlane.f32.xlu0 %v1221
    %v1223 = vpop.xlane.xlu0 %1222
    %v1224 = vrsqrt.pop %v1223
    %v1225 = vmul.f32 %v1223, %v1224
    %vm1226 = vcmp.eq.f32.partialorder %v1223, inf
    %v1227 = vsel %vm1226, %v1223, %v1225
    %vm1228 = vcmp.eq.f32.partialorder %v1223, 0.0
    %v1229 = vand.u32 %v1223, 2147483648
    %v1230 = vsel %vm1228, %v1229, %v1227
    %v1231 = vmax.f32 %v1230, 1e-12
    %v1232 = vrcp.pop %v1231
    %v1233 = vmul.f32 1.0, %v1232
    %v1234 = vmul.f32 %v1216, %v1233
    %1235 = vst [vmem:[#allocation7] sm:$0x3] %v1234
    // Predicated region
    $region22: #{tpu_custom_call.1} parent=1 // pred_check
      _
    $region23: #{tpu_custom_call.1} parent=1 // pred_check_branch
      %1237 = sbr.rel (0) target = $region25
    $region24: #{tpu_custom_call.1} parent=1 // pred_region
      %s1239 = ssub.s32 32, 32
      %1240 = vsyncadd [#allocation4], %s1239
      %s1242 = sshll.u32 [#allocation7], 4
      %s1243 = int_to_ptr.vmem [resolvable:$true] %s1242
      %1245 = dma.vmem_to_hbm [thread:$0]  %s1243, 32, %s3, [#allocation4]
    $region25: #{tpu_custom_call.1} parent=1 // pred_fallthru
      _
    // Predicated region
    $region26: #{tpu_custom_call.1} parent=1 // pred_check
      _
    $region27: #{tpu_custom_call.1} parent=1 // pred_check_branch
      %1247 = sbr.rel (0) target = $region29
    $region28: #{tpu_custom_call.1} parent=1 // pred_region
      %1248 = dma.done [#allocation4], 32
    $region29: #{tpu_custom_call.1} parent=1 // pred_fallthru
      _
    %1249 = vsyncpa [#allocation3], 1
    %1250 = vsyncpa [#allocation6], 1
    %1251 = vsyncpa [#allocation4], 1

</llo_original>
